<compile_context>
chip_gen: v7x
topology: tpu7x:2x2x1
jax: 0.10.0
libtpu: 0.0.40
codegen_flags: <defaults>
</compile_context>

<pallas_src>
import functools
import math

import jax
import jax.numpy as jnp
from jax.experimental import pallas as pl
from jax.experimental.pallas import tpu as pltpu


# --------------------------------------------------------------------------- #
# Kernel
# --------------------------------------------------------------------------- #
def _causal_fused_kernel(x_ref,     # (bblk*T_in,  N*F_pad)   lane-dense (128)
                         wf_ref,    # (N*F_pad, N*D)          kron(I_N, Wf_pad)
                         bf_ref,    # (1, N*D)                f32
                         wt_ref,    # (T_out, T_in)           Wt^T (no batch kron)
                         wh_ref,    # (N*D, N*H_pad)          kron(I_N, [Wp|Wu|Wl|0])
                         bh_ref,    # (1, N*H_pad)            f32
                         out_ref,   # (bblk*T_out, N*H_pad)   lane-dense (128)
                         *, bblk, t_in, t_out):
    wdt = wf_ref.dtype

    # 1) feature projection + bias + ReLU (one MXU pass, K = N*F_pad = 128)
    h0 = jnp.dot(x_ref[...], wf_ref[...], preferred_element_type=jnp.float32)
    h0 = jnp.maximum(h0 + bf_ref[...], 0.0)            # f32, (bblk*T_in, N*D)
    h0 = h0.astype(wdt)

    wt = wt_ref[...]
    wh = wh_ref[...]
    bh = bh_ref[...]

    # 2) per-batch kron-free temporal mix + ReLU, then fused 3-head matmul,
    #    stored into a lane-dense (128-wide) output slab.  bblk is small and
    #    static, so this unrolls at trace time; row slices are 8-aligned.
    for b in range(bblk):
        h0_b = h0[b * t_in:(b + 1) * t_in, :]                    # (T_in, N*D)
        h_b = jnp.dot(wt, h0_b, preferred_element_type=jnp.float32)
        h_b = jnp.maximum(h_b, 0.0).astype(wdt)                  # (T_out, N*D)
        o_b = jnp.dot(h_b, wh, preferred_element_type=jnp.float32) + bh
        out_ref[b * t_out:(b + 1) * t_out, :] = o_b.astype(out_ref.dtype)


# --------------------------------------------------------------------------- #
# One-time weight preparation (hoisted out of the hot path)
# --------------------------------------------------------------------------- #
def _pad_width(width, n, max_ratio=4):
    """Smallest padded per-node width so n*width is a multiple of 128 lanes."""
    step = 128 // math.gcd(n, 128)
    padded = -(-width // step) * step
    if padded > max_ratio * max(width, 1):
        return width            # padding cost outweighs lane-density win
    return padded


def prepare_params(params, *, num_nodes, compute_dtype=jnp.float32):
    """Build the padded / block-diagonal weights once per parameter set."""
    f32 = jnp.float32
    wf = params["wf"].astype(f32)                                 # (F_in, D)
    bf = params["bf"].astype(f32)                                 # (1, D)
    wt = params["wt"].astype(f32)                                 # (T_in, T_out)
    wh = jnp.concatenate([params["wp"], params["wu"], params["wl"]],
                         axis=1).astype(f32)                      # (D, 6)
    bh = jnp.concatenate([params["bp"], params["bu"], params["bl"]],
                         axis=1).astype(f32)                      # (1, 6)

    f_in, d = wf.shape
    t_in, t_out = wt.shape
    h = wh.shape[1]
    o = params["wp"].shape[1]
    n = num_nodes

    f_pad = _pad_width(f_in, n)     # 4 -> 8  => x lanes = 128
    h_pad = _pad_width(h, n)        # 6 -> 8  => out lanes = 128

    wf_p = jnp.pad(wf, ((0, f_pad - f_in), (0, 0)))               # zero rows
    wh_p = jnp.pad(wh, ((0, 0), (0, h_pad - h)))                  # zero cols
    bh_p = jnp.pad(bh, ((0, 0), (0, h_pad - h)))

    eye_n = jnp.eye(n, dtype=f32)
    prepared = {
        "wf_blk": jnp.kron(eye_n, wf_p).astype(compute_dtype),    # (N*F_pad, N*D)
        "bf_t":   jnp.tile(bf, (1, n)),                           # (1, N*D) f32
        "wt_T":   wt.T.astype(compute_dtype),                     # (T_out, T_in)
        "wh_blk": jnp.kron(eye_n, wh_p).astype(compute_dtype),    # (N*D, N*H_pad)
        "bh_t":   jnp.tile(bh_p, (1, n)),                         # (1, N*H_pad) f32
    }
    meta = dict(num_nodes=n, f_in=f_in, f_pad=f_pad, d=d, t_in=t_in,
                t_out=t_out, h=h, h_pad=h_pad, o=o)
    return prepared, meta


# --------------------------------------------------------------------------- #
# Forward pass
# --------------------------------------------------------------------------- #
def causal_forward(x, prepared, meta, *, batch_blocks=None):
    """x: (B, T_in, N, F_in) -> (point, low, up), each (B, T_out, N, 2)."""
    B, t_in, n, f_in = x.shape
    assert t_in == meta["t_in"] and n == meta["num_nodes"] and f_in == meta["f_in"]
    f_pad, h_pad, o, t_out = meta["f_pad"], meta["h_pad"], meta["o"], meta["t_out"]

    wf_blk, bf_t = prepared["wf_blk"], prepared["bf_t"]
    wt_T, wh_blk, bh_t = prepared["wt_T"], prepared["wh_blk"], prepared["bh_t"]
    cdt = wf_blk.dtype

    # Batch split: only when each block still has MXU-filling row counts.
    if batch_blocks is None:
        batch_blocks = 2 if (B % 2 == 0 and (B // 2) * t_in >= 128) else 1
    nb = batch_blocks if (batch_blocks >= 1 and B % batch_blocks == 0) else 1
    bblk = B // nb

    # rows = (batch, time), lanes = (node, feature), zero-padded to 128 lanes.
    xp = jnp.pad(x.astype(jnp.float32),
                 ((0, 0), (0, 0), (0, 0), (0, f_pad - f_in)))
    x2 = xp.reshape(B * t_in, n * f_pad).astype(cdt)

    rows_in, k1 = x2.shape
    nd = wf_blk.shape[1]
    nh = wh_blk.shape[1]
    rows_out = B * t_out

    flops = (2 * rows_in * k1 * nd            # feature projection
             + 2 * B * t_out * t_in * nd      # temporal mix
             + 2 * rows_out * nd * nh)        # fused heads
    bytes_accessed = sum(int(a.size) * a.dtype.itemsize
                         for a in (x2, wf_blk, bf_t, wt_T, wh_blk, bh_t))
    bytes_accessed += rows_out * nh * 4       # f32 output

    kernel = functools.partial(_causal_fused_kernel,
                               bblk=bblk, t_in=t_in, t_out=t_out)
    full2 = lambda a: pl.BlockSpec(a.shape, lambda i: (0, 0))

    out = pl.pallas_call(
        kernel,
        out_shape=jax.ShapeDtypeStruct((rows_out, nh), jnp.float32),
        grid_spec=pl.GridSpec(
            grid=(nb,),
            in_specs=[
                pl.BlockSpec((bblk * t_in, k1), lambda i: (i, 0)),
                full2(wf_blk), full2(bf_t),
                full2(wt_T),
                full2(wh_blk), full2(bh_t),
            ],
            out_specs=pl.BlockSpec((bblk * t_out, nh), lambda i: (i, 0)),
        ),
        compiler_params=pltpu.CompilerParams(
            dimension_semantics=("parallel",),
            vmem_limit_bytes=32 * 1024 * 1024),
        cost_estimate=pl.CostEstimate(flops=flops, transcendentals=0,
                                      bytes_accessed=bytes_accessed),
    )(x2, wf_blk, bf_t, wt_T, wh_blk, bh_t)

    out = out.reshape(B, t_out, n, h_pad)
    point = out[..., 0:o]
    q_up = out[..., o:2 * o]
    q_low = out[..., 2 * o:3 * o]
    return point, q_low, q_up


def causal_model_quantile_regress(x, params, *, batch_blocks=None,
                                  compute_dtype=jnp.float32):
    """Convenience one-shot path (prepares weights on the fly)."""
    prepared, meta = prepare_params(params, num_nodes=x.shape[2],
                                    compute_dtype=compute_dtype)
    return causal_forward(x, prepared, meta, batch_blocks=batch_blocks)


# --------------------------------------------------------------------------- #
# Pure-JAX reference + param init
# --------------------------------------------------------------------------- #
def _reference(x, params):
    h0 = jnp.maximum(
        jnp.einsum("btnf,fd->btnd", x.astype(jnp.float32), params["wf"])
        + params["bf"][0], 0.0)
    h = jnp.maximum(jnp.einsum("btnd,to->bond", h0, params["wt"]), 0.0)
    point = jnp.einsum("bond,dk->bonk", h, params["wp"]) + params["bp"][0]
    up = jnp.einsum("bond,dk->bonk", h, params["wu"]) + params["bu"][0]
    low = jnp.einsum("bond,dk->bonk", h, params["wl"]) + params["bl"][0]
    return point, low, up


def _init_params(key, t_in, t_out, f_in, d_hidden=16, n_out=2):
    ks = jax.random.split(key, 8)
    return {
        "wf": jax.random.normal(ks[0], (f_in, d_hidden), jnp.float32) * 0.3,
        "bf": jax.random.normal(ks[1], (1, d_hidden), jnp.float32) * 0.1,
        "wt": jax.random.normal(ks[2], (t_in, t_out), jnp.float32) * 0.3,
        "wp": jax.random.normal(ks[3], (d_hidden, n_out), jnp.float32) * 0.3,
        "bp": jnp.zeros((1, n_out), jnp.float32),
        "wu": jax.random.normal(ks[4], (d_hidden, n_out), jnp.float32) * 0.3,
        "bu": jnp.full((1, n_out), 0.05, jnp.float32),
        "wl": jax.random.normal(ks[5], (d_hidden, n_out), jnp.float32) * 0.3,
        "bl": jnp.full((1, n_out), -0.05, jnp.float32),
    }


if __name__ == "__main__":
    key = jax.random.PRNGKey(0)
    kx, kp = jax.random.split(key)

    # (batch, input_window, num_nodes, feature_dim_in)
    B, T_in, N, F_in = 2, 8, 16, 4
    T_out = 8

    x = jax.random.normal(kx, (B, T_in, N, F_in), jnp.float32)
    params = _init_params(kp, T_in, T_out, F_in)

    # Weight preparation runs ONCE, outside the per-call hot path.
    prepared, meta = prepare_params(params, num_nodes=N)

    point, low, up = causal_forward(x, prepared, meta)
    jax.block_until_ready((point, low, up))

    rp, rl, ru = _reference(x, params)
    assert point.shape == (B, T_out, N, 2)
    assert jnp.allclose(point, rp, atol=1e-4)
    assert jnp.allclose(low, rl, atol=1e-4)
    assert jnp.allclose(up, ru, atol=1e-4)

    # Exercise the explicit multi-block grid path (large-batch layout) too.
    p2, l2, u2 = causal_forward(x, prepared, meta, batch_blocks=2)
    assert jnp.allclose(p2, rp, atol=1e-4)
    assert jnp.allclose(l2, rl, atol=1e-4)
    assert jnp.allclose(u2, ru, atol=1e-4)

    # bf16 weight/activation path (v6e/v7x DMA saver); f32 accumulation.
    prepared16, meta16 = prepare_params(params, num_nodes=N,
                                        compute_dtype=jnp.bfloat16)
    pb, lb, ub = causal_forward(x, prepared16, meta16)
    jax.block_until_ready((pb, lb, ub))
    assert jnp.allclose(pb, rp, atol=1e-1, rtol=1e-1)
    assert jnp.allclose(lb, rl, atol=1e-1, rtol=1e-1)
    assert jnp.allclose(ub, ru, atol=1e-1, rtol=1e-1)

    print("KERNEL_OK")
</pallas_src>

<mosaic_0001>
module attributes {stable_mosaic.version = 11 : i64} {
  func.func @_causal_fused_kernel(%arg0: i32, %arg1: memref<16x128xf32, #tpu.memory_space<vmem>>, %arg2: memref<128x256xf32, #tpu.memory_space<vmem>>, %arg3: memref<1x256xf32, #tpu.memory_space<vmem>>, %arg4: memref<8x8xf32, #tpu.memory_space<vmem>>, %arg5: memref<256x128xf32, #tpu.memory_space<vmem>>, %arg6: memref<1x128xf32, #tpu.memory_space<vmem>>, %arg7: memref<16x128xf32, #tpu.memory_space<vmem>>) attributes {dimension_semantics = [#tpu.dimension_semantics<parallel>], iteration_bounds = array<i64: 1>, scalar_prefetch = 0 : i64, scratch_operands = 0 : i64, tpu.core_type = #tpu.core_type<tc>, window_params = [{transform_indices = @transform_0, window_bounds = array<i64: 16, 128>}, {pipeline_mode = #tpu.pipeline_mode<synchronous>, transform_indices = @transform_1, window_bounds = array<i64: 128, 256>}, {pipeline_mode = #tpu.pipeline_mode<synchronous>, transform_indices = @transform_2, window_bounds = array<i64: 1, 256>}, {pipeline_mode = #tpu.pipeline_mode<synchronous>, transform_indices = @transform_3, window_bounds = array<i64: 8, 8>}, {pipeline_mode = #tpu.pipeline_mode<synchronous>, transform_indices = @transform_4, window_bounds = array<i64: 256, 128>}, {pipeline_mode = #tpu.pipeline_mode<synchronous>, transform_indices = @transform_5, window_bounds = array<i64: 1, 128>}, {transform_indices = @transform_6, window_bounds = array<i64: 16, 128>}]} {
    %c0 = arith.constant 0 : index
    %c0_0 = arith.constant 0 : index
    %0 = vector.load %arg1[%c0, %c0_0] : memref<16x128xf32, #tpu.memory_space<vmem>>, vector<16x128xf32>
    %c0_1 = arith.constant 0 : index
    %c0_2 = arith.constant 0 : index
    %1 = vector.load %arg2[%c0_1, %c0_2] : memref<128x256xf32, #tpu.memory_space<vmem>>, vector<128x256xf32>
    %cst = arith.constant dense<0.000000e+00> : vector<16x256xf32>
    %2 = tpu.matmul %0, %1, %cst {dimension_numbers = #tpu.dot_dimension_numbers<[1], [0], [0], [1], [0, 0, 1, 1], [], []>} : vector<16x128xf32>, vector<128x256xf32>, vector<16x256xf32> -> vector<16x256xf32>
    %c0_3 = arith.constant 0 : index
    %c0_4 = arith.constant 0 : index
    %3 = vector.load %arg3[%c0_3, %c0_4] : memref<1x256xf32, #tpu.memory_space<vmem>>, vector<1x256xf32>
    %4 = vector.broadcast %3 : vector<1x256xf32> to vector<16x256xf32>
    %5 = arith.addf %2, %4 : vector<16x256xf32>
    %cst_5 = arith.constant 0.000000e+00 : f32
    %6 = vector.broadcast %cst_5 : f32 to vector<16x256xf32>
    %7 = arith.maximumf %5, %6 : vector<16x256xf32>
    %c0_6 = arith.constant 0 : index
    %c0_7 = arith.constant 0 : index
    %8 = vector.load %arg4[%c0_6, %c0_7] : memref<8x8xf32, #tpu.memory_space<vmem>>, vector<8x8xf32>
    %c0_8 = arith.constant 0 : index
    %c0_9 = arith.constant 0 : index
    %9 = vector.load %arg5[%c0_8, %c0_9] : memref<256x128xf32, #tpu.memory_space<vmem>>, vector<256x128xf32>
    %c0_10 = arith.constant 0 : index
    %c0_11 = arith.constant 0 : index
    %10 = vector.load %arg6[%c0_10, %c0_11] : memref<1x128xf32, #tpu.memory_space<vmem>>, vector<1x128xf32>
    %11 = vector.extract_strided_slice %7 {offsets = [0, 0], sizes = [8, 256], strides = [1, 1]} : vector<16x256xf32> to vector<8x256xf32>
    %cst_12 = arith.constant dense<0.000000e+00> : vector<8x256xf32>
    %12 = tpu.matmul %8, %11, %cst_12 {dimension_numbers = #tpu.dot_dimension_numbers<[1], [0], [0], [1], [0, 0, 1, 1], [], []>} : vector<8x8xf32>, vector<8x256xf32>, vector<8x256xf32> -> vector<8x256xf32>
    %cst_13 = arith.constant 0.000000e+00 : f32
    %13 = vector.broadcast %cst_13 : f32 to vector<8x256xf32>
    %14 = arith.maximumf %12, %13 : vector<8x256xf32>
    %cst_14 = arith.constant dense<0.000000e+00> : vector<8x128xf32>
    %15 = tpu.matmul %14, %9, %cst_14 {dimension_numbers = #tpu.dot_dimension_numbers<[1], [0], [0], [1], [0, 0, 1, 1], [], []>} : vector<8x256xf32>, vector<256x128xf32>, vector<8x128xf32> -> vector<8x128xf32>
    %16 = vector.broadcast %10 : vector<1x128xf32> to vector<8x128xf32>
    %17 = arith.addf %15, %16 : vector<8x128xf32>
    %c0_15 = arith.constant 0 : index
    %c0_16 = arith.constant 0 : index
    %18 = vector.load %arg7[%c0_15, %c0_16] : memref<16x128xf32, #tpu.memory_space<vmem>>, vector<8x128xf32>
    tpu.vector_store %arg7[%c0_15, %c0_16], %17 {strides = array<i32>} : memref<16x128xf32, #tpu.memory_space<vmem>>, vector<8x128xf32>,
    %19 = vector.extract_strided_slice %7 {offsets = [8, 0], sizes = [8, 256], strides = [1, 1]} : vector<16x256xf32> to vector<8x256xf32>
    %cst_17 = arith.constant dense<0.000000e+00> : vector<8x256xf32>
    %20 = tpu.matmul %8, %19, %cst_17 {dimension_numbers = #tpu.dot_dimension_numbers<[1], [0], [0], [1], [0, 0, 1, 1], [], []>} : vector<8x8xf32>, vector<8x256xf32>, vector<8x256xf32> -> vector<8x256xf32>
    %cst_18 = arith.constant 0.000000e+00 : f32
    %21 = vector.broadcast %cst_18 : f32 to vector<8x256xf32>
    %22 = arith.maximumf %20, %21 : vector<8x256xf32>
    %cst_19 = arith.constant dense<0.000000e+00> : vector<8x128xf32>
    %23 = tpu.matmul %22, %9, %cst_19 {dimension_numbers = #tpu.dot_dimension_numbers<[1], [0], [0], [1], [0, 0, 1, 1], [], []>} : vector<8x256xf32>, vector<256x128xf32>, vector<8x128xf32> -> vector<8x128xf32>
    %24 = vector.broadcast %10 : vector<1x128xf32> to vector<8x128xf32>
    %25 = arith.addf %23, %24 : vector<8x128xf32>
    %c8 = arith.constant 8 : index
    %c0_20 = arith.constant 0 : index
    %26 = vector.load %arg7[%c8, %c0_20] : memref<16x128xf32, #tpu.memory_space<vmem>>, vector<8x128xf32>
    tpu.vector_store %arg7[%c8, %c0_20], %25 {strides = array<i32>} : memref<16x128xf32, #tpu.memory_space<vmem>>, vector<8x128xf32>,
    return
  }
  func.func @transform_0(%arg0: i32) -> (i32, i32) {
    %c0_i32 = arith.constant 0 : i32
    %c0_i32_0 = arith.constant 0 : i32
    return %arg0, %c0_i32 : i32, i32
  }
  func.func @transform_1(%arg0: i32) -> (i32, i32) {
    %c0_i32 = arith.constant 0 : i32
    %c0_i32_0 = arith.constant 0 : i32
    %c0_i32_1 = arith.constant 0 : i32
    return %c0_i32, %c0_i32_0 : i32, i32
  }
  func.func @transform_2(%arg0: i32) -> (i32, i32) {
    %c0_i32 = arith.constant 0 : i32
    %c0_i32_0 = arith.constant 0 : i32
    %c0_i32_1 = arith.constant 0 : i32
    return %c0_i32, %c0_i32_0 : i32, i32
  }
  func.func @transform_3(%arg0: i32) -> (i32, i32) {
    %c0_i32 = arith.constant 0 : i32
    %c0_i32_0 = arith.constant 0 : i32
    %c0_i32_1 = arith.constant 0 : i32
    return %c0_i32, %c0_i32_0 : i32, i32
  }
  func.func @transform_4(%arg0: i32) -> (i32, i32) {
    %c0_i32 = arith.constant 0 : i32
    %c0_i32_0 = arith.constant 0 : i32
    %c0_i32_1 = arith.constant 0 : i32
    return %c0_i32, %c0_i32_0 : i32, i32
  }
  func.func @transform_5(%arg0: i32) -> (i32, i32) {
    %c0_i32 = arith.constant 0 : i32
    %c0_i32_0 = arith.constant 0 : i32
    %c0_i32_1 = arith.constant 0 : i32
    return %c0_i32, %c0_i32_0 : i32, i32
  }
  func.func @transform_6(%arg0: i32) -> (i32, i32) {
    %c0_i32 = arith.constant 0 : i32
    %c0_i32_0 = arith.constant 0 : i32
    return %arg0, %c0_i32 : i32, i32
  }
}

</mosaic_0001>

<llo_original>
// kernel: tpu_custom_call.1
$region0: #{tpu_custom_call.1}
  #allocation0 [shape = 'u32[]', space=smem, size = 0x4, offset = 0x4, fixed_abs, tag = 'smem constant byte address 0x4 - core index']
  #allocation1 [shape = 'u32[144,128]{1,0:T(1,128)}', space=vmem, size = 0x12000, scoped, tag = 'internal scratch']
  %s0 = inlined_call_operand.hbm [shape: f32[16,128], index: 0, kind: input, shape index: {}]
  %s1 = inlined_call_operand.hbm [shape: f32[128,256], index: 1, kind: input, shape index: {}]
  %s2 = inlined_call_operand.vmem [shape: f32[1,256], index: 2, kind: input, shape index: {}]
  %s3 = inlined_call_operand.vmem [shape: f32[8,8], index: 3, kind: input, shape index: {}]
  %s4 = inlined_call_operand.hbm [shape: f32[256,128], index: 4, kind: input, shape index: {}]
  %s5 = inlined_call_operand.vmem [shape: f32[1,128], index: 5, kind: input, shape index: {}]
  %s6 = inlined_call_operand.hbm [shape: f32[16,128], index: 6, kind: output, shape index: {}]
  %s7 = sld [smem:[#allocation0]]
  $region46: #{tpu_custom_call.1} parent=0
    _
  %s9 = ssub.s32 1, %s7
  %s10 = scalar_select 0, %s9, %s7
  $region1: #{tpu_custom_call.1} parent=0
    #allocation2 [shape = 'u8[8192]{0}', space=vmem, size = 0x2000, scoped, tag = 'input window, operand 0, single buffered']
    #allocation3 [shape = 's32[1]{0}', space=sflag, size = 0x4, scoped, tag = 'scoped memory for tpu_custom_call.1']
    #allocation4 [shape = 's32[1]{0}', space=sflag, size = 0x4, scoped, tag = 'scoped memory for tpu_custom_call.1']
    #allocation5 [shape = 'u8[131072]{0}', space=vmem, size = 0x20000, scoped, tag = 'input window, operand 1, single buffered']
    #allocation6 [shape = 's32[1]{0}', space=sflag, size = 0x4, scoped, tag = 'scoped memory for tpu_custom_call.1']
    #allocation7 [shape = 'u8[131072]{0}', space=vmem, size = 0x20000, scoped, tag = 'input window, operand 4, single buffered']
    #allocation8 [shape = 'u8[8192]{0}', space=vmem, size = 0x2000, scoped, tag = 'output window, operand 0, single buffered']
    %11 = vsyncpa [#allocation3], 0
    %12 = vsyncpa [#allocation6], 0
    %13 = vsyncpa [#allocation4], 0
    // Predicated region
    $region2: #{tpu_custom_call.1} parent=1 // pred_check
      _
    $region3: #{tpu_custom_call.1} parent=1 // pred_check_branch
      %15 = sbr.rel (0) target = $region5
    $region4: #{tpu_custom_call.1} parent=1 // pred_region
      %s17 = ssub.s32 256, 256
      %18 = vsyncadd [#allocation3], %s17
      %s19 = sshll.u32 [#allocation2], 4
      %s20 = int_to_ptr.vmem [resolvable:$true] %s19
      %25 = dma.hbm_to_vmem [thread:$0]  %s0, 256, %s20, [#allocation3], 128, 128, 8
    $region5: #{tpu_custom_call.1} parent=1 // pred_fallthru
      _
    // Predicated region
    $region6: #{tpu_custom_call.1} parent=1 // pred_check
      _
    $region7: #{tpu_custom_call.1} parent=1 // pred_check_branch
      %27 = sbr.rel (0) target = $region9
    $region8: #{tpu_custom_call.1} parent=1 // pred_region
      %s29 = ssub.s32 4096, 4096
      %30 = vsyncadd [#allocation6], %s29
      %s31 = sshll.u32 [#allocation5], 4
      %s32 = int_to_ptr.vmem [resolvable:$true] %s31
      %37 = dma.hbm_to_vmem [thread:$0]  %s1, 4096, %s32, [#allocation6], 256, 256, 16
    $region9: #{tpu_custom_call.1} parent=1 // pred_fallthru
      _
    // Predicated region
    $region10: #{tpu_custom_call.1} parent=1 // pred_check
      _
    $region11: #{tpu_custom_call.1} parent=1 // pred_check_branch
      %39 = sbr.rel (0) target = $region13
    $region12: #{tpu_custom_call.1} parent=1 // pred_region
      _
    $region13: #{tpu_custom_call.1} parent=1 // pred_fallthru
      _
    // Predicated region
    $region14: #{tpu_custom_call.1} parent=1 // pred_check
      _
    $region15: #{tpu_custom_call.1} parent=1 // pred_check_branch
      %41 = sbr.rel (0) target = $region17
    $region16: #{tpu_custom_call.1} parent=1 // pred_region
      _
    $region17: #{tpu_custom_call.1} parent=1 // pred_fallthru
      _
    // Predicated region
    $region18: #{tpu_custom_call.1} parent=1 // pred_check
      _
    $region19: #{tpu_custom_call.1} parent=1 // pred_check_branch
      %43 = sbr.rel (0) target = $region21
    $region20: #{tpu_custom_call.1} parent=1 // pred_region
      %s45 = ssub.s32 4096, 4096
      %46 = vsyncadd [#allocation6], %s45
      %s47 = sshll.u32 [#allocation7], 4
      %s48 = int_to_ptr.vmem [resolvable:$true] %s47
      %53 = dma.hbm_to_vmem [thread:$0]  %s4, 4096, %s48, [#allocation6], 128, 128, 8
    $region21: #{tpu_custom_call.1} parent=1 // pred_fallthru
      _
    // Predicated region
    $region22: #{tpu_custom_call.1} parent=1 // pred_check
      _
    $region23: #{tpu_custom_call.1} parent=1 // pred_check_branch
      %55 = sbr.rel (0) target = $region25
    $region24: #{tpu_custom_call.1} parent=1 // pred_region
      _
    $region25: #{tpu_custom_call.1} parent=1 // pred_fallthru
      _
    // Predicated region
    $region26: #{tpu_custom_call.1} parent=1 // pred_check
      _
    $region27: #{tpu_custom_call.1} parent=1 // pred_check_branch
      %57 = sbr.rel (0) target = $region29
    $region28: #{tpu_custom_call.1} parent=1 // pred_region
      %58 = dma.done [#allocation3], 256
    $region29: #{tpu_custom_call.1} parent=1 // pred_fallthru
      _
    // Predicated region
    $region30: #{tpu_custom_call.1} parent=1 // pred_check
      _
    $region31: #{tpu_custom_call.1} parent=1 // pred_check_branch
      %60 = sbr.rel (0) target = $region33
    $region32: #{tpu_custom_call.1} parent=1 // pred_region
      %61 = dma.done [#allocation6], 4096
    $region33: #{tpu_custom_call.1} parent=1 // pred_fallthru
      _
    // Predicated region
    $region34: #{tpu_custom_call.1} parent=1 // pred_check
      _
    $region35: #{tpu_custom_call.1} parent=1 // pred_check_branch
      %63 = sbr.rel (0) target = $region37
    $region36: #{tpu_custom_call.1} parent=1 // pred_region
      %64 = dma.done [#allocation6], 4096
    $region37: #{tpu_custom_call.1} parent=1 // pred_fallthru
      _
    %v65 = vld [vmem:[#allocation2] sm:$0xff]
    %v66 = vld [vmem:[#allocation2 + $0x8] sm:$0xff]
    %v67 = vld [vmem:[#allocation5] sm:$0xff]
    %v68 = vld [vmem:[#allocation5 + $0x8] sm:$0xff]
    %v69 = vld [vmem:[#allocation5 + $0x10] sm:$0xff]
    %v70 = vld [vmem:[#allocation5 + $0x18] sm:$0xff]
    %v71 = vld [vmem:[#allocation5 + $0x20] sm:$0xff]
    %v72 = vld [vmem:[#allocation5 + $0x28] sm:$0xff]
    %v73 = vld [vmem:[#allocation5 + $0x30] sm:$0xff]
    %v74 = vld [vmem:[#allocation5 + $0x38] sm:$0xff]
    %v75 = vld [vmem:[#allocation5 + $0x40] sm:$0xff]
    %v76 = vld [vmem:[#allocation5 + $0x48] sm:$0xff]
    %v77 = vld [vmem:[#allocation5 + $0x50] sm:$0xff]
    %v78 = vld [vmem:[#allocation5 + $0x58] sm:$0xff]
    %v79 = vld [vmem:[#allocation5 + $0x60] sm:$0xff]
    %v80 = vld [vmem:[#allocation5 + $0x68] sm:$0xff]
    %v81 = vld [vmem:[#allocation5 + $0x70] sm:$0xff]
    %v82 = vld [vmem:[#allocation5 + $0x78] sm:$0xff]
    %v83 = vld [vmem:[#allocation5 + $0x80] sm:$0xff]
    %v84 = vld [vmem:[#allocation5 + $0x88] sm:$0xff]
    %v85 = vld [vmem:[#allocation5 + $0x90] sm:$0xff]
    %v86 = vld [vmem:[#allocation5 + $0x98] sm:$0xff]
    %v87 = vld [vmem:[#allocation5 + $0xa0] sm:$0xff]
    %v88 = vld [vmem:[#allocation5 + $0xa8] sm:$0xff]
    %v89 = vld [vmem:[#allocation5 + $0xb0] sm:$0xff]
    %v90 = vld [vmem:[#allocation5 + $0xb8] sm:$0xff]
    %v91 = vld [vmem:[#allocation5 + $0xc0] sm:$0xff]
    %v92 = vld [vmem:[#allocation5 + $0xc8] sm:$0xff]
    %v93 = vld [vmem:[#allocation5 + $0xd0] sm:$0xff]
    %v94 = vld [vmem:[#allocation5 + $0xd8] sm:$0xff]
    %v95 = vld [vmem:[#allocation5 + $0xe0] sm:$0xff]
    %v96 = vld [vmem:[#allocation5 + $0xe8] sm:$0xff]
    %v97 = vld [vmem:[#allocation5 + $0xf0] sm:$0xff]
    %v98 = vld [vmem:[#allocation5 + $0xf8] sm:$0xff]
    %v99 = vld [vmem:[%s2] sm:$0x3]
    %v101 = vlaneseq
    %v102 = vshrl.u32 %v101, 7
    %v103 = vsub.s32 0, %v102
    %v104 = vrot.slane %v99, %v103
    %v105 = vlaneseq
    %v106 = vshrl.u32 %v105, 7
    %v107 = vsub.s32 1, %v106
    %v108 = vrot.slane %v99, %v107
    %111 = vmatprep.subr.mxu0 %v68
    %112 = vmatpush1.msra.mxu0 %v67
    %113 = vmatprep.subr.mxu0 %v70
    %114 = vmatpush1.msra.mxu0 %v69
    %115 = vmatprep.subr.mxu0 %v72
    %116 = vmatpush1.msra.mxu0 %v71
    %117 = vmatprep.subr.mxu0 %v74
    %118 = vmatpush1.msra.mxu0 %v73
    %119 = vmatprep.subr.mxu0 %v76
    %120 = vmatpush1.msra.mxu0 %v75
    %121 = vmatprep.subr.mxu0 %v78
    %122 = vmatpush1.msra.mxu0 %v77
    %123 = vmatprep.subr.mxu0 %v80
    %124 = vmatpush1.msra.mxu0 %v79
    %125 = vmatprep.subr.mxu0 %v82
    %126 = vmatpush1.msra.mxu0 %v81
    %127 = vmatprep.subr.mxu0 %v84
    %128 = vmatpush1.msra.mxu0 %v83
    %129 = vmatprep.subr.mxu0 %v86
    %130 = vmatpush1.msra.mxu0 %v85
    %131 = vmatprep.subr.mxu0 %v88
    %132 = vmatpush1.msra.mxu0 %v87
    %133 = vmatprep.subr.mxu0 %v90
    %134 = vmatpush1.msra.mxu0 %v89
    %135 = vmatprep.subr.mxu0 %v92
    %136 = vmatpush1.msra.mxu0 %v91
    %137 = vmatprep.subr.mxu0 %v94
    %138 = vmatpush1.msra.mxu0 %v93
    %139 = vmatprep.subr.mxu0 %v96
    %140 = vmatpush1.msra.mxu0 %v95
    %141 = vmatprep.subr.mxu0 %v98
    %142 = vmatpush1.msra.mxu0 %v97
    %143 = vmatprep.subr.mxu0 0.0
    %144 = vmatpush1.msra.mxu0 0.0
    %145 = vmatprep.subr.mxu0 0.0
    %146 = vmatpush1.msra.mxu0 0.0
    %147 = vmatprep.subr.mxu0 0.0
    %148 = vmatpush1.msra.mxu0 0.0
    %149 = vmatprep.subr.mxu0 0.0
    %150 = vmatpush1.msra.mxu0 0.0
    %151 = vmatprep.subr.mxu0 0.0
    %152 = vmatpush1.msra.mxu0 0.0
    %153 = vmatprep.subr.mxu0 0.0
    %154 = vmatpush1.msra.mxu0 0.0
    %155 = vmatprep.subr.mxu0 0.0
    %156 = vmatpush1.msra.mxu0 0.0
    %157 = vmatprep.subr.mxu0 0.0
    %158 = vmatpush1.msra.mxu0 0.0
    %159 = vmatprep.subr.mxu0 0.0
    %160 = vmatpush1.msra.mxu0 0.0
    %161 = vmatprep.subr.mxu0 0.0
    %162 = vmatpush1.msra.mxu0 0.0
    %163 = vmatprep.subr.mxu0 0.0
    %164 = vmatpush1.msra.mxu0 0.0
    %165 = vmatprep.subr.mxu0 0.0
    %166 = vmatpush1.msra.mxu0 0.0
    %167 = vmatprep.subr.mxu0 0.0
    %168 = vmatpush1.msra.mxu0 0.0
    %169 = vmatprep.subr.mxu0 0.0
    %170 = vmatpush1.msra.mxu0 0.0
    %171 = vmatprep.subr.mxu0 0.0
    %172 = vmatpush1.msra.mxu0 0.0
    %173 = vmatprep.subr.mxu0 0.0
    %174 = vmatpush1.msra.mxu0 0.0
    %175 = vmatprep.mubr.f32.mxu0 0.0
    %176 = vmatmul.mubr.f32.gmra.mrb[0].mxu0 %v65
    %v177 = vpop.f32.mrb[0].mxu0
    %v178 = vadd.f32 %v104, %v177
    %v179 = vpop.f32.mrb[0].mxu0
    %v180 = vadd.f32 %v108, %v179
    %181 = vmatprep.mubr.f32.mxu0 0.0
    %182 = vmatmul.mubr.f32.gmra.mrb[0].mxu0 %v66
    %v183 = vpop.f32.mrb[0].mxu0
    %v184 = vadd.f32 %v104, %v183
    %v185 = vpop.f32.mrb[0].mxu0
    %v186 = vadd.f32 %v108, %v185
    %187 = vdwg.mxu0
    %v188 = vmax.f32 %v178, 0.0
    %v189 = vmax.f32 %v180, 0.0
    %v190 = vmax.f32 %v184, 0.0
    %v191 = vmax.f32 %v186, 0.0
    %v192 = vld [vmem:[%s3] sm:$0xff]
    %v193 = vld [vmem:[#allocation7] sm:$0xff]
    %v194 = vld [vmem:[#allocation7 + $0x8] sm:$0xff]
    %v195 = vld [vmem:[#allocation7 + $0x10] sm:$0xff]
    %v196 = vld [vmem:[#allocation7 + $0x18] sm:$0xff]
    %v197 = vld [vmem:[#allocation7 + $0x20] sm:$0xff]
    %v198 = vld [vmem:[#allocation7 + $0x28] sm:$0xff]
    %v199 = vld [vmem:[#allocation7 + $0x30] sm:$0xff]
    %v200 = vld [vmem:[#allocation7 + $0x38] sm:$0xff]
    %v201 = vld [vmem:[#allocation7 + $0x40] sm:$0xff]
    %v202 = vld [vmem:[#allocation7 + $0x48] sm:$0xff]
    %v203 = vld [vmem:[#allocation7 + $0x50] sm:$0xff]
    %v204 = vld [vmem:[#allocation7 + $0x58] sm:$0xff]
    %v205 = vld [vmem:[#allocation7 + $0x60] sm:$0xff]
    %v206 = vld [vmem:[#allocation7 + $0x68] sm:$0xff]
    %v207 = vld [vmem:[#allocation7 + $0x70] sm:$0xff]
    %v208 = vld [vmem:[#allocation7 + $0x78] sm:$0xff]
    %v209 = vld [vmem:[#allocation7 + $0x80] sm:$0xff]
    %v210 = vld [vmem:[#allocation7 + $0x88] sm:$0xff]
    %v211 = vld [vmem:[#allocation7 + $0x90] sm:$0xff]
    %v212 = vld [vmem:[#allocation7 + $0x98] sm:$0xff]
    %v213 = vld [vmem:[#allocation7 + $0xa0] sm:$0xff]
    %v214 = vld [vmem:[#allocation7 + $0xa8] sm:$0xff]
    %v215 = vld [vmem:[#allocation7 + $0xb0] sm:$0xff]
    %v216 = vld [vmem:[#allocation7 + $0xb8] sm:$0xff]
    %v217 = vld [vmem:[#allocation7 + $0xc0] sm:$0xff]
    %v218 = vld [vmem:[#allocation7 + $0xc8] sm:$0xff]
    %v219 = vld [vmem:[#allocation7 + $0xd0] sm:$0xff]
    %v220 = vld [vmem:[#allocation7 + $0xd8] sm:$0xff]
    %v221 = vld [vmem:[#allocation7 + $0xe0] sm:$0xff]
    %v222 = vld [vmem:[#allocation7 + $0xe8] sm:$0xff]
    %v223 = vld [vmem:[#allocation7 + $0xf0] sm:$0xff]
    %v224 = vld [vmem:[#allocation7 + $0xf8] sm:$0xff]
    %v225 = vld [vmem:[%s5] sm:$0x1]
    %vm226 = vcmask 64512
    %v228 = vsel %vm226, %v192, 0
    %230 = vmatprep.subr.mxu0 %v189
    %231 = vmatpush1.msra.mxu0 %v188
    %232 = vmatprep.subr.mxu0 0.0
    %233 = vmatpush1.msra.mxu0 0.0
    %234 = vmatprep.subr.mxu0 0.0
    %235 = vmatpush1.msra.mxu0 0.0
    %236 = vmatprep.subr.mxu0 0.0
    %237 = vmatpush1.msra.mxu0 0.0
    %238 = vmatprep.subr.mxu0 0.0
    %239 = vmatpush1.msra.mxu0 0.0
    %240 = vmatprep.subr.mxu0 0.0
    %241 = vmatpush1.msra.mxu0 0.0
    %242 = vmatprep.subr.mxu0 0.0
    %243 = vmatpush1.msra.mxu0 0.0
    %244 = vmatprep.subr.mxu0 0.0
    %245 = vmatpush1.msra.mxu0 0.0
    %246 = vmatprep.subr.mxu0 0.0
    %247 = vmatpush1.msra.mxu0 0.0
    %248 = vmatprep.subr.mxu0 0.0
    %249 = vmatpush1.msra.mxu0 0.0
    %250 = vmatprep.subr.mxu0 0.0
    %251 = vmatpush1.msra.mxu0 0.0
    %252 = vmatprep.subr.mxu0 0.0
    %253 = vmatpush1.msra.mxu0 0.0
    %254 = vmatprep.subr.mxu0 0.0
    %255 = vmatpush1.msra.mxu0 0.0
    %256 = vmatprep.subr.mxu0 0.0
    %257 = vmatpush1.msra.mxu0 0.0
    %258 = vmatprep.subr.mxu0 0.0
    %259 = vmatpush1.msra.mxu0 0.0
    %260 = vmatprep.subr.mxu0 0.0
    %261 = vmatpush1.msra.mxu0 0.0
    %262 = vmatprep.subr.mxu0 0.0
    %263 = vmatpush1.msra.mxu0 0.0
    %264 = vmatprep.subr.mxu0 0.0
    %265 = vmatpush1.msra.mxu0 0.0
    %266 = vmatprep.subr.mxu0 0.0
    %267 = vmatpush1.msra.mxu0 0.0
    %268 = vmatprep.subr.mxu0 0.0
    %269 = vmatpush1.msra.mxu0 0.0
    %270 = vmatprep.subr.mxu0 0.0
    %271 = vmatpush1.msra.mxu0 0.0
    %272 = vmatprep.subr.mxu0 0.0
    %273 = vmatpush1.msra.mxu0 0.0
    %274 = vmatprep.subr.mxu0 0.0
    %275 = vmatpush1.msra.mxu0 0.0
    %276 = vmatprep.subr.mxu0 0.0
    %277 = vmatpush1.msra.mxu0 0.0
    %278 = vmatprep.subr.mxu0 0.0
    %279 = vmatpush1.msra.mxu0 0.0
    %280 = vmatprep.subr.mxu0 0.0
    %281 = vmatpush1.msra.mxu0 0.0
    %282 = vmatprep.subr.mxu0 0.0
    %283 = vmatpush1.msra.mxu0 0.0
    %284 = vmatprep.subr.mxu0 0.0
    %285 = vmatpush1.msra.mxu0 0.0
    %286 = vmatprep.subr.mxu0 0.0
    %287 = vmatpush1.msra.mxu0 0.0
    %288 = vmatprep.subr.mxu0 0.0
    %289 = vmatpush1.msra.mxu0 0.0
    %290 = vmatprep.subr.mxu0 0.0
    %291 = vmatpush1.msra.mxu0 0.0
    %292 = vmatprep.subr.mxu0 0.0
    %293 = vmatpush1.msra.mxu0 0.0
    %294 = vmatprep.mubr.f32.mxu0 0.0
    %295 = vmatmul.mubr.f32.gmra.mrb[0].mxu0 %v228
    %v296 = vpop.f32.mrb[0].mxu0
    %v297 = vadd.f32 0.0, %v296
    %v298 = vpop.f32.mrb[0].mxu0
    %v299 = vadd.f32 0.0, %v298
    %300 = vdwg.mxu0
    %v301 = vmax.f32 %v297, 0.0
    %v302 = vmax.f32 %v299, 0.0
    %v304 = vlaneseq
    %v305 = vshrl.u32 %v304, 7
    %v306 = vsub.s32 0, %v305
    %v307 = vrot.slane %v225, %v306
    %309 = vmatprep.subr.mxu0 0.0
    %310 = vmatpush1.msra.mxu0 %v193
    %311 = vmatprep.subr.mxu0 0.0
    %312 = vmatpush1.msra.mxu0 %v194
    %313 = vmatprep.subr.mxu0 0.0
    %314 = vmatpush1.msra.mxu0 %v195
    %315 = vmatprep.subr.mxu0 0.0
    %316 = vmatpush1.msra.mxu0 %v196
    %317 = vmatprep.subr.mxu0 0.0
    %318 = vmatpush1.msra.mxu0 %v197
    %319 = vmatprep.subr.mxu0 0.0
    %320 = vmatpush1.msra.mxu0 %v198
    %321 = vmatprep.subr.mxu0 0.0
    %322 = vmatpush1.msra.mxu0 %v199
    %323 = vmatprep.subr.mxu0 0.0
    %324 = vmatpush1.msra.mxu0 %v200
    %325 = vmatprep.subr.mxu0 0.0
    %326 = vmatpush1.msra.mxu0 %v201
    %327 = vmatprep.subr.mxu0 0.0
    %328 = vmatpush1.msra.mxu0 %v202
    %329 = vmatprep.subr.mxu0 0.0
    %330 = vmatpush1.msra.mxu0 %v203
    %331 = vmatprep.subr.mxu0 0.0
    %332 = vmatpush1.msra.mxu0 %v204
    %333 = vmatprep.subr.mxu0 0.0
    %334 = vmatpush1.msra.mxu0 %v205
    %335 = vmatprep.subr.mxu0 0.0
    %336 = vmatpush1.msra.mxu0 %v206
    %337 = vmatprep.subr.mxu0 0.0
    %338 = vmatpush1.msra.mxu0 %v207
    %339 = vmatprep.subr.mxu0 0.0
    %340 = vmatpush1.msra.mxu0 %v208
    %341 = vmatprep.subr.mxu0 0.0
    %342 = vmatpush1.msra.mxu0 %v209
    %343 = vmatprep.subr.mxu0 0.0
    %344 = vmatpush1.msra.mxu0 %v210
    %345 = vmatprep.subr.mxu0 0.0
    %346 = vmatpush1.msra.mxu0 %v211
    %347 = vmatprep.subr.mxu0 0.0
    %348 = vmatpush1.msra.mxu0 %v212
    %349 = vmatprep.subr.mxu0 0.0
    %350 = vmatpush1.msra.mxu0 %v213
    %351 = vmatprep.subr.mxu0 0.0
    %352 = vmatpush1.msra.mxu0 %v214
    %353 = vmatprep.subr.mxu0 0.0
    %354 = vmatpush1.msra.mxu0 %v215
    %355 = vmatprep.subr.mxu0 0.0
    %356 = vmatpush1.msra.mxu0 %v216
    %357 = vmatprep.subr.mxu0 0.0
    %358 = vmatpush1.msra.mxu0 %v217
    %359 = vmatprep.subr.mxu0 0.0
    %360 = vmatpush1.msra.mxu0 %v218
    %361 = vmatprep.subr.mxu0 0.0
    %362 = vmatpush1.msra.mxu0 %v219
    %363 = vmatprep.subr.mxu0 0.0
    %364 = vmatpush1.msra.mxu0 %v220
    %365 = vmatprep.subr.mxu0 0.0
    %366 = vmatpush1.msra.mxu0 %v221
    %367 = vmatprep.subr.mxu0 0.0
    %368 = vmatpush1.msra.mxu0 %v222
    %369 = vmatprep.subr.mxu0 0.0
    %370 = vmatpush1.msra.mxu0 %v223
    %371 = vmatprep.subr.mxu0 0.0
    %372 = vmatpush1.msra.mxu0 %v224
    %373 = vmatprep.mubr.f32.mxu0 %v302
    %374 = vmatmul.mubr.f32.gmra.mrb[0].mxu0 %v301
    %v375 = vpop.f32.mrb[0].mxu0
    %v376 = vadd.f32 %v307, %v375
    %v377 = vpop.f32.mrb[0].mxu0
    %378 = vdwg.mxu0
    %379 = vst [vmem:[#allocation8] sm:$0xff] %v376
    %380 = vmatprep.subr.mxu0 %v191
    %381 = vmatpush1.msra.mxu0 %v190
    %382 = vmatprep.subr.mxu0 0.0
    %383 = vmatpush1.msra.mxu0 0.0
    %384 = vmatprep.subr.mxu0 0.0
    %385 = vmatpush1.msra.mxu0 0.0
    %386 = vmatprep.subr.mxu0 0.0
    %387 = vmatpush1.msra.mxu0 0.0
    %388 = vmatprep.subr.mxu0 0.0
    %389 = vmatpush1.msra.mxu0 0.0
    %390 = vmatprep.subr.mxu0 0.0
    %391 = vmatpush1.msra.mxu0 0.0
    %392 = vmatprep.subr.mxu0 0.0
    %393 = vmatpush1.msra.mxu0 0.0
    %394 = vmatprep.subr.mxu0 0.0
    %395 = vmatpush1.msra.mxu0 0.0
    %396 = vmatprep.subr.mxu0 0.0
    %397 = vmatpush1.msra.mxu0 0.0
    %398 = vmatprep.subr.mxu0 0.0
    %399 = vmatpush1.msra.mxu0 0.0
    %400 = vmatprep.subr.mxu0 0.0
    %401 = vmatpush1.msra.mxu0 0.0
    %402 = vmatprep.subr.mxu0 0.0
    %403 = vmatpush1.msra.mxu0 0.0
    %404 = vmatprep.subr.mxu0 0.0
    %405 = vmatpush1.msra.mxu0 0.0
    %406 = vmatprep.subr.mxu0 0.0
    %407 = vmatpush1.msra.mxu0 0.0
    %408 = vmatprep.subr.mxu0 0.0
    %409 = vmatpush1.msra.mxu0 0.0
    %410 = vmatprep.subr.mxu0 0.0
    %411 = vmatpush1.msra.mxu0 0.0
    %412 = vmatprep.subr.mxu0 0.0
    %413 = vmatpush1.msra.mxu0 0.0
    %414 = vmatprep.subr.mxu0 0.0
    %415 = vmatpush1.msra.mxu0 0.0
    %416 = vmatprep.subr.mxu0 0.0
    %417 = vmatpush1.msra.mxu0 0.0
    %418 = vmatprep.subr.mxu0 0.0
    %419 = vmatpush1.msra.mxu0 0.0
    %420 = vmatprep.subr.mxu0 0.0
    %421 = vmatpush1.msra.mxu0 0.0
    %422 = vmatprep.subr.mxu0 0.0
    %423 = vmatpush1.msra.mxu0 0.0
    %424 = vmatprep.subr.mxu0 0.0
    %425 = vmatpush1.msra.mxu0 0.0
    %426 = vmatprep.subr.mxu0 0.0
    %427 = vmatpush1.msra.mxu0 0.0
    %428 = vmatprep.subr.mxu0 0.0
    %429 = vmatpush1.msra.mxu0 0.0
    %430 = vmatprep.subr.mxu0 0.0
    %431 = vmatpush1.msra.mxu0 0.0
    %432 = vmatprep.subr.mxu0 0.0
    %433 = vmatpush1.msra.mxu0 0.0
    %434 = vmatprep.subr.mxu0 0.0
    %435 = vmatpush1.msra.mxu0 0.0
    %436 = vmatprep.subr.mxu0 0.0
    %437 = vmatpush1.msra.mxu0 0.0
    %438 = vmatprep.subr.mxu0 0.0
    %439 = vmatpush1.msra.mxu0 0.0
    %440 = vmatprep.subr.mxu0 0.0
    %441 = vmatpush1.msra.mxu0 0.0
    %442 = vmatprep.subr.mxu0 0.0
    %443 = vmatpush1.msra.mxu0 0.0
    %444 = vmatprep.mubr.f32.mxu0 0.0
    %445 = vmatmul.mubr.f32.gmra.mrb[0].mxu0 %v228
    %v446 = vpop.f32.mrb[0].mxu0
    %v447 = vadd.f32 0.0, %v446
    %v448 = vpop.f32.mrb[0].mxu0
    %v449 = vadd.f32 0.0, %v448
    %450 = vdwg.mxu0
    %v451 = vmax.f32 %v447, 0.0
    %v452 = vmax.f32 %v449, 0.0
    %453 = vmatprep.subr.mxu0 0.0
    %454 = vmatpush1.msra.mxu0 %v193
    %455 = vmatprep.subr.mxu0 0.0
    %456 = vmatpush1.msra.mxu0 %v194
    %457 = vmatprep.subr.mxu0 0.0
    %458 = vmatpush1.msra.mxu0 %v195
    %459 = vmatprep.subr.mxu0 0.0
    %460 = vmatpush1.msra.mxu0 %v196
    %461 = vmatprep.subr.mxu0 0.0
    %462 = vmatpush1.msra.mxu0 %v197
    %463 = vmatprep.subr.mxu0 0.0
    %464 = vmatpush1.msra.mxu0 %v198
    %465 = vmatprep.subr.mxu0 0.0
    %466 = vmatpush1.msra.mxu0 %v199
    %467 = vmatprep.subr.mxu0 0.0
    %468 = vmatpush1.msra.mxu0 %v200
    %469 = vmatprep.subr.mxu0 0.0
    %470 = vmatpush1.msra.mxu0 %v201
    %471 = vmatprep.subr.mxu0 0.0
    %472 = vmatpush1.msra.mxu0 %v202
    %473 = vmatprep.subr.mxu0 0.0
    %474 = vmatpush1.msra.mxu0 %v203
    %475 = vmatprep.subr.mxu0 0.0
    %476 = vmatpush1.msra.mxu0 %v204
    %477 = vmatprep.subr.mxu0 0.0
    %478 = vmatpush1.msra.mxu0 %v205
    %479 = vmatprep.subr.mxu0 0.0
    %480 = vmatpush1.msra.mxu0 %v206
    %481 = vmatprep.subr.mxu0 0.0
    %482 = vmatpush1.msra.mxu0 %v207
    %483 = vmatprep.subr.mxu0 0.0
    %484 = vmatpush1.msra.mxu0 %v208
    %485 = vmatprep.subr.mxu0 0.0
    %486 = vmatpush1.msra.mxu0 %v209
    %487 = vmatprep.subr.mxu0 0.0
    %488 = vmatpush1.msra.mxu0 %v210
    %489 = vmatprep.subr.mxu0 0.0
    %490 = vmatpush1.msra.mxu0 %v211
    %491 = vmatprep.subr.mxu0 0.0
    %492 = vmatpush1.msra.mxu0 %v212
    %493 = vmatprep.subr.mxu0 0.0
    %494 = vmatpush1.msra.mxu0 %v213
    %495 = vmatprep.subr.mxu0 0.0
    %496 = vmatpush1.msra.mxu0 %v214
    %497 = vmatprep.subr.mxu0 0.0
    %498 = vmatpush1.msra.mxu0 %v215
    %499 = vmatprep.subr.mxu0 0.0
    %500 = vmatpush1.msra.mxu0 %v216
    %501 = vmatprep.subr.mxu0 0.0
    %502 = vmatpush1.msra.mxu0 %v217
    %503 = vmatprep.subr.mxu0 0.0
    %504 = vmatpush1.msra.mxu0 %v218
    %505 = vmatprep.subr.mxu0 0.0
    %506 = vmatpush1.msra.mxu0 %v219
    %507 = vmatprep.subr.mxu0 0.0
    %508 = vmatpush1.msra.mxu0 %v220
    %509 = vmatprep.subr.mxu0 0.0
    %510 = vmatpush1.msra.mxu0 %v221
    %511 = vmatprep.subr.mxu0 0.0
    %512 = vmatpush1.msra.mxu0 %v222
    %513 = vmatprep.subr.mxu0 0.0
    %514 = vmatpush1.msra.mxu0 %v223
    %515 = vmatprep.subr.mxu0 0.0
    %516 = vmatpush1.msra.mxu0 %v224
    %517 = vmatprep.mubr.f32.mxu0 %v452
    %518 = vmatmul.mubr.f32.gmra.mrb[0].mxu0 %v451
    %v519 = vpop.f32.mrb[0].mxu0
    %v520 = vadd.f32 %v307, %v519
    %v521 = vpop.f32.mrb[0].mxu0
    %522 = vdwg.mxu0
    %523 = vst [vmem:[#allocation8 + $0x8] sm:$0xff] %v520
    // Predicated region
    $region38: #{tpu_custom_call.1} parent=1 // pred_check
      _
    $region39: #{tpu_custom_call.1} parent=1 // pred_check_branch
      %525 = sbr.rel (0) target = $region41
    $region40: #{tpu_custom_call.1} parent=1 // pred_region
      %s527 = ssub.s32 256, 256
      %528 = vsyncadd [#allocation4], %s527
      %s529 = sshll.u32 [#allocation8], 4
      %s530 = int_to_ptr.vmem [resolvable:$true] %s529
      %535 = dma.vmem_to_hbm [thread:$0]  %s530, 256, %s6, [#allocation4], 128, 128, 8
    $region41: #{tpu_custom_call.1} parent=1 // pred_fallthru
      _
    // Predicated region
    $region42: #{tpu_custom_call.1} parent=1 // pred_check
      _
    $region43: #{tpu_custom_call.1} parent=1 // pred_check_branch
      %537 = sbr.rel (0) target = $region45
    $region44: #{tpu_custom_call.1} parent=1 // pred_region
      %538 = dma.done [#allocation4], 256
    $region45: #{tpu_custom_call.1} parent=1 // pred_fallthru
      _
    %539 = vsyncpa [#allocation3], 1
    %540 = vsyncpa [#allocation6], 1
    %541 = vsyncpa [#allocation4], 1

</llo_original>
